<compile_context>
chip_gen: v7x
topology: tpu7x:2x2x1
jax: 0.10.0
libtpu: 0.0.40
codegen_flags: <defaults>
</compile_context>

<pallas_src>
import math
import functools

import jax
import jax.numpy as jnp
from jax import lax
from jax.experimental import pallas as pl
from jax.experimental.pallas import tpu as pltpu


# ----------------------------------------------------------------------------
# Fused kernel: per-batch QKV projection + (no-softmax) tiled attention.
#   x_ref : (1, S, D_in)  f32   -- one batch element
#   w_ref : (D_in, 3E)    bf16  -- fused head-major weight, scale folded in Wq
#   o_ref : (1, S, E)     f32   -- lane-dense output block
# ----------------------------------------------------------------------------
def _fused_mha_kernel(x_ref, w_ref, o_ref, *, num_heads, head_dim, embed_dim,
                      q_tile, kv_tile):
    f32 = jnp.float32
    bf16 = jnp.bfloat16
    E = embed_dim
    S = x_ref.shape[1]

    # One full-width projection matmul (bf16 operands, f32 accumulation).
    x = x_ref[0].astype(bf16)                                       # (S, D_in)
    qkv = jnp.dot(x, w_ref[...], preferred_element_type=f32)        # (S, 3E) f32

    # Head-major, lane-contiguous slabs.  Wq already carries 1/sqrt(hd).
    q_all = qkv[:, :E].astype(bf16)                                  # (S, E)
    k_all = qkv[:, E:2 * E].astype(bf16)                             # (S, E)
    v_all = qkv[:, 2 * E:].astype(bf16)                              # (S, E)

    # Static (compile-time) q-tile / kv-tile loops: scores buffer is bounded
    # to (q_tile, kv_tile); accumulate scores @ v in f32 across kv tiles.
    for q0 in range(0, S, q_tile):
        q1 = min(S, q0 + q_tile)
        out_heads = []
        for h in range(num_heads):
            lo = h * head_dim
            hi = lo + head_dim
            q = q_all[q0:q1, lo:hi]                                  # (tq, hd) bf16
            acc = jnp.zeros((q1 - q0, head_dim), dtype=f32)
            for k0 in range(0, S, kv_tile):
                k1 = min(S, k0 + kv_tile)
                k = k_all[k0:k1, lo:hi]                              # (tkv, hd) bf16
                v = v_all[k0:k1, lo:hi]                              # (tkv, hd) bf16
                # q @ k^T without an explicit transpose (contract last dims).
                s = lax.dot_general(
                    q, k, (((1,), (1,)), ((), ())),
                    preferred_element_type=f32)                      # (tq, tkv) f32
                # TODO(synk): masked_fill(mask == 0, -9e15) would go here.
                # NOTE: no softmax, per the reference module.
                acc = acc + jnp.dot(s.astype(bf16), v,
                                    preferred_element_type=f32)      # (tq, hd) f32
            out_heads.append(acc)
        # One lane-dense, full-width store per q tile.
        o_tile = jnp.concatenate(out_heads, axis=-1)                  # (tq, E)
        o_ref[0, q0:q1, :] = o_tile.astype(o_ref.dtype)


def _pick_vmem_limit(S, D_in, E, q_tile, kv_tile):
    # Per-step working set (double-buffered pipeline blocks + intermediates).
    x_blk = S * D_in * 4 * 2            # f32 input block, 2 buffers
    w_blk = D_in * 3 * E * 2 * 2        # bf16 fused weight, 2 buffers
    o_blk = S * E * 4 * 2               # f32 output block, 2 buffers
    qkv_f32 = S * 3 * E * 4             # projection result
    qkv_bf16 = S * 3 * E * 2            # bf16 copies of q/k/v
    scores = q_tile * kv_tile * 4 * 2   # scores + head accumulator
    est = x_blk + w_blk + o_blk + qkv_f32 + qkv_bf16 + scores
    # Default scoped VMEM is 16 MiB (v5e) / 32 MiB (v6e/v7x); raise with 2x
    # headroom but stay below v7x's 64 MiB physical VMEM per core.
    return int(max(32 * 2 ** 20, min(56 * 2 ** 20, 2 * est)))


def modified_mha_forward(x, w_qkv, num_heads):
    B, S, D_in = x.shape
    three_e = w_qkv.shape[1]
    E = three_e // 3
    head_dim = E // num_heads

    q_tile = min(S, 512)
    kv_tile = min(S, 512)

    kernel = functools.partial(
        _fused_mha_kernel,
        num_heads=num_heads,
        head_dim=head_dim,
        embed_dim=E,
        q_tile=q_tile,
        kv_tile=kv_tile,
    )
    return pl.pallas_call(
        kernel,
        out_shape=jax.ShapeDtypeStruct((B, S, E), x.dtype),
        grid=(B,),
        in_specs=[
            pl.BlockSpec((1, S, D_in), lambda b: (b, 0, 0)),
            pl.BlockSpec((D_in, 3 * E), lambda b: (0, 0)),   # resident weight
        ],
        out_specs=pl.BlockSpec((1, S, E), lambda b: (b, 0, 0)),
        compiler_params=pltpu.CompilerParams(
            dimension_semantics=("parallel",),
            vmem_limit_bytes=_pick_vmem_limit(S, D_in, E, q_tile, kv_tile),
        ),
    )(x, w_qkv)


# ----------------------------------------------------------------------------
# Module wrapper (mirrors the PyTorch ModifiedMultiheadAttention, bias=False)
# ----------------------------------------------------------------------------
class ModifiedMultiheadAttentionPallas:
    def __init__(self, input_dim, embed_dim, num_heads, key):
        assert embed_dim % num_heads == 0, (
            "Embedding dimension must be 0 modulo number of heads."
        )
        self.input_dim = input_dim
        self.embed_dim = embed_dim
        self.num_heads = num_heads
        self.head_dim = embed_dim // num_heads

        # xavier_uniform on a PyTorch-layout (3*embed_dim, input_dim) weight.
        fan_out, fan_in = 3 * embed_dim, input_dim
        bound = math.sqrt(6.0 / (fan_in + fan_out))
        self.w = jax.random.uniform(
            key, (fan_out, fan_in), dtype=jnp.float32, minval=-bound, maxval=bound
        )

        # One-time host-side re-layout: W^T has columns ordered
        # [h0:(q k v), h1:(q k v), ...]; split into head-major Wq/Wk/Wv, fold
        # the 1/sqrt(head_dim) scale into Wq, fuse into one (D_in, 3E) bf16
        # weight so the kernel never touches an interleaved 3*head_dim axis.
        w_t = self.w.T.reshape(input_dim, num_heads, 3, self.head_dim)
        wq = w_t[:, :, 0, :].reshape(input_dim, embed_dim)
        wk = w_t[:, :, 1, :].reshape(input_dim, embed_dim)
        wv = w_t[:, :, 2, :].reshape(input_dim, embed_dim)
        scale = 1.0 / math.sqrt(self.head_dim)
        self.w_qkv = jnp.concatenate(
            [wq * scale, wk, wv], axis=1
        ).astype(jnp.bfloat16)

    def __call__(self, x, mask=None):
        B, S, D = x.shape
        assert D == self.input_dim
        # TODO(synk): mask / return_attention paths not implemented (the
        # reference forward is exercised with mask=None).
        assert mask is None
        return modified_mha_forward(x, self.w_qkv, self.num_heads)


# ----------------------------------------------------------------------------
# Pure-JAX reference implementing the PyTorch module math exactly (from the
# original f32 (3E, D_in) weight), to validate the fused kernel + re-layout.
# ----------------------------------------------------------------------------
def _reference(x, w, num_heads):
    B, S, D = x.shape
    three_e = w.shape[0]
    E = three_e // 3
    hd = E // num_heads
    qkv = jnp.einsum("bsd,ed->bse", x, w)                    # x @ W^T -> (B,S,3E)
    qkv = qkv.reshape(B, S, num_heads, 3 * hd)
    qkv = jnp.transpose(qkv, (0, 2, 1, 3))                   # (B, H, S, 3hd)
    q, k, v = jnp.split(qkv, 3, axis=-1)
    attn = jnp.einsum("bhqd,bhkd->bhqk", q, k) / math.sqrt(hd)
    vals = jnp.einsum("bhqk,bhkd->bhqd", attn, v)
    vals = jnp.transpose(vals, (0, 2, 1, 3)).reshape(B, S, E)
    return vals


if __name__ == "__main__":
    B, S = 2, 8
    input_dim, embed_dim, num_heads = 32, 32, 4

    key = jax.random.PRNGKey(0)
    k_w, k_x = jax.random.split(key)

    mha = ModifiedMultiheadAttentionPallas(input_dim, embed_dim, num_heads, k_w)
    x = jax.random.normal(k_x, (B, S, input_dim), dtype=jnp.float32)

    out = mha(x)
    jax.block_until_ready(out)

    ref = _reference(x, mha.w, num_heads)
    assert out.shape == (B, S, embed_dim)
    # bf16 MXU operands (f32 accumulation) -> bf16-level tolerance.
    assert jnp.allclose(out, ref, atol=5e-2, rtol=5e-2)

    print("KERNEL_OK")
</pallas_src>

<mosaic_0001>
module attributes {stable_mosaic.version = 11 : i64} {
  func.func @_fused_mha_kernel(%arg0: i32, %arg1: memref<1x8x32xf32, #tpu.memory_space<vmem>>, %arg2: memref<32x96xbf16, #tpu.memory_space<vmem>>, %arg3: memref<1x8x32xf32, #tpu.memory_space<vmem>>) attributes {dimension_semantics = [#tpu.dimension_semantics<parallel>], iteration_bounds = array<i64: 2>, scalar_prefetch = 0 : i64, scratch_operands = 0 : i64, tpu.core_type = #tpu.core_type<tc>, window_params = [{transform_indices = @transform_0, window_bounds = array<i64: 1, 8, 32>}, {pipeline_mode = #tpu.pipeline_mode<synchronous>, transform_indices = @transform_1, window_bounds = array<i64: 32, 96>}, {transform_indices = @transform_2, window_bounds = array<i64: 1, 8, 32>}]} {
    %c0 = arith.constant 0 : index
    %c0_0 = arith.constant 0 : index
    %c0_1 = arith.constant 0 : index
    %0 = vector.load %arg1[%c0, %c0_0, %c0_1] : memref<1x8x32xf32, #tpu.memory_space<vmem>>, vector<1x8x32xf32>
    %1 = vector.shape_cast %0 : vector<1x8x32xf32> to vector<8x32xf32>
    %2 = arith.truncf %1 : vector<8x32xf32> to vector<8x32xbf16>
    %c0_2 = arith.constant 0 : index
    %c0_3 = arith.constant 0 : index
    %3 = vector.load %arg2[%c0_2, %c0_3] : memref<32x96xbf16, #tpu.memory_space<vmem>>, vector<32x96xbf16>
    %cst = arith.constant dense<0.000000e+00> : vector<8x96xf32>
    %4 = tpu.matmul %2, %3, %cst {dimension_numbers = #tpu.dot_dimension_numbers<[1], [0], [0], [1], [0, 0, 1, 1], [], []>} : vector<8x32xbf16>, vector<32x96xbf16>, vector<8x96xf32> -> vector<8x96xf32>
    %5 = vector.extract_strided_slice %4 {offsets = [0, 0], sizes = [8, 32], strides = [1, 1]} : vector<8x96xf32> to vector<8x32xf32>
    %6 = arith.truncf %5 : vector<8x32xf32> to vector<8x32xbf16>
    %7 = vector.extract_strided_slice %4 {offsets = [0, 32], sizes = [8, 32], strides = [1, 1]} : vector<8x96xf32> to vector<8x32xf32>
    %8 = arith.truncf %7 : vector<8x32xf32> to vector<8x32xbf16>
    %9 = vector.extract_strided_slice %4 {offsets = [0, 64], sizes = [8, 32], strides = [1, 1]} : vector<8x96xf32> to vector<8x32xf32>
    %10 = arith.truncf %9 : vector<8x32xf32> to vector<8x32xbf16>
    %11 = vector.extract_strided_slice %6 {offsets = [0, 0], sizes = [8, 8], strides = [1, 1]} : vector<8x32xbf16> to vector<8x8xbf16>
    %cst_4 = arith.constant 0.000000e+00 : f32
    %12 = vector.broadcast %cst_4 : f32 to vector<8x8xf32>
    %13 = vector.extract_strided_slice %8 {offsets = [0, 0], sizes = [8, 8], strides = [1, 1]} : vector<8x32xbf16> to vector<8x8xbf16>
    %14 = vector.extract_strided_slice %10 {offsets = [0, 0], sizes = [8, 8], strides = [1, 1]} : vector<8x32xbf16> to vector<8x8xbf16>
    %cst_5 = arith.constant dense<0.000000e+00> : vector<8x8xf32>
    %15 = tpu.matmul %11, %13, %cst_5 {dimension_numbers = #tpu.dot_dimension_numbers<[1], [1], [0], [0], [0, 0, 1, 0], [], []>} : vector<8x8xbf16>, vector<8x8xbf16>, vector<8x8xf32> -> vector<8x8xf32>
    %16 = arith.truncf %15 : vector<8x8xf32> to vector<8x8xbf16>
    %cst_6 = arith.constant dense<0.000000e+00> : vector<8x8xf32>
    %17 = tpu.matmul %16, %14, %cst_6 {dimension_numbers = #tpu.dot_dimension_numbers<[1], [0], [0], [1], [0, 0, 1, 1], [], []>} : vector<8x8xbf16>, vector<8x8xbf16>, vector<8x8xf32> -> vector<8x8xf32>
    %18 = arith.addf %12, %17 : vector<8x8xf32>
    %19 = vector.extract_strided_slice %6 {offsets = [0, 8], sizes = [8, 8], strides = [1, 1]} : vector<8x32xbf16> to vector<8x8xbf16>
    %cst_7 = arith.constant 0.000000e+00 : f32
    %20 = vector.broadcast %cst_7 : f32 to vector<8x8xf32>
    %21 = vector.extract_strided_slice %8 {offsets = [0, 8], sizes = [8, 8], strides = [1, 1]} : vector<8x32xbf16> to vector<8x8xbf16>
    %22 = vector.extract_strided_slice %10 {offsets = [0, 8], sizes = [8, 8], strides = [1, 1]} : vector<8x32xbf16> to vector<8x8xbf16>
    %cst_8 = arith.constant dense<0.000000e+00> : vector<8x8xf32>
    %23 = tpu.matmul %19, %21, %cst_8 {dimension_numbers = #tpu.dot_dimension_numbers<[1], [1], [0], [0], [0, 0, 1, 0], [], []>} : vector<8x8xbf16>, vector<8x8xbf16>, vector<8x8xf32> -> vector<8x8xf32>
    %24 = arith.truncf %23 : vector<8x8xf32> to vector<8x8xbf16>
    %cst_9 = arith.constant dense<0.000000e+00> : vector<8x8xf32>
    %25 = tpu.matmul %24, %22, %cst_9 {dimension_numbers = #tpu.dot_dimension_numbers<[1], [0], [0], [1], [0, 0, 1, 1], [], []>} : vector<8x8xbf16>, vector<8x8xbf16>, vector<8x8xf32> -> vector<8x8xf32>
    %26 = arith.addf %20, %25 : vector<8x8xf32>
    %27 = vector.extract_strided_slice %6 {offsets = [0, 16], sizes = [8, 8], strides = [1, 1]} : vector<8x32xbf16> to vector<8x8xbf16>
    %cst_10 = arith.constant 0.000000e+00 : f32
    %28 = vector.broadcast %cst_10 : f32 to vector<8x8xf32>
    %29 = vector.extract_strided_slice %8 {offsets = [0, 16], sizes = [8, 8], strides = [1, 1]} : vector<8x32xbf16> to vector<8x8xbf16>
    %30 = vector.extract_strided_slice %10 {offsets = [0, 16], sizes = [8, 8], strides = [1, 1]} : vector<8x32xbf16> to vector<8x8xbf16>
    %cst_11 = arith.constant dense<0.000000e+00> : vector<8x8xf32>
    %31 = tpu.matmul %27, %29, %cst_11 {dimension_numbers = #tpu.dot_dimension_numbers<[1], [1], [0], [0], [0, 0, 1, 0], [], []>} : vector<8x8xbf16>, vector<8x8xbf16>, vector<8x8xf32> -> vector<8x8xf32>
    %32 = arith.truncf %31 : vector<8x8xf32> to vector<8x8xbf16>
    %cst_12 = arith.constant dense<0.000000e+00> : vector<8x8xf32>
    %33 = tpu.matmul %32, %30, %cst_12 {dimension_numbers = #tpu.dot_dimension_numbers<[1], [0], [0], [1], [0, 0, 1, 1], [], []>} : vector<8x8xbf16>, vector<8x8xbf16>, vector<8x8xf32> -> vector<8x8xf32>
    %34 = arith.addf %28, %33 : vector<8x8xf32>
    %35 = vector.extract_strided_slice %6 {offsets = [0, 24], sizes = [8, 8], strides = [1, 1]} : vector<8x32xbf16> to vector<8x8xbf16>
    %cst_13 = arith.constant 0.000000e+00 : f32
    %36 = vector.broadcast %cst_13 : f32 to vector<8x8xf32>
    %37 = vector.extract_strided_slice %8 {offsets = [0, 24], sizes = [8, 8], strides = [1, 1]} : vector<8x32xbf16> to vector<8x8xbf16>
    %38 = vector.extract_strided_slice %10 {offsets = [0, 24], sizes = [8, 8], strides = [1, 1]} : vector<8x32xbf16> to vector<8x8xbf16>
    %cst_14 = arith.constant dense<0.000000e+00> : vector<8x8xf32>
    %39 = tpu.matmul %35, %37, %cst_14 {dimension_numbers = #tpu.dot_dimension_numbers<[1], [1], [0], [0], [0, 0, 1, 0], [], []>} : vector<8x8xbf16>, vector<8x8xbf16>, vector<8x8xf32> -> vector<8x8xf32>
    %40 = arith.truncf %39 : vector<8x8xf32> to vector<8x8xbf16>
    %cst_15 = arith.constant dense<0.000000e+00> : vector<8x8xf32>
    %41 = tpu.matmul %40, %38, %cst_15 {dimension_numbers = #tpu.dot_dimension_numbers<[1], [0], [0], [1], [0, 0, 1, 1], [], []>} : vector<8x8xbf16>, vector<8x8xbf16>, vector<8x8xf32> -> vector<8x8xf32>
    %42 = arith.addf %36, %41 : vector<8x8xf32>
    %43 = tpu.concatenate %18, %26, %34, %42 in 1 : vector<8x8xf32>, vector<8x8xf32>, vector<8x8xf32>, vector<8x8xf32> -> vector<8x32xf32>
    %c0_16 = arith.constant 0 : index
    %c0_17 = arith.constant 0 : index
    %c0_18 = arith.constant 0 : index
    %44 = vector.load %arg3[%c0_16, %c0_17, %c0_18] : memref<1x8x32xf32, #tpu.memory_space<vmem>>, vector<1x8x32xf32>
    %45 = vector.shape_cast %44 : vector<1x8x32xf32> to vector<8x32xf32>
    %46 = vector.shape_cast %43 : vector<8x32xf32> to vector<1x8x32xf32>
    tpu.vector_store %arg3[%c0_16, %c0_17, %c0_18], %46 {strides = array<i32>} : memref<1x8x32xf32, #tpu.memory_space<vmem>>, vector<1x8x32xf32>,
    return
  }
  func.func @transform_0(%arg0: i32) -> (i32, i32, i32) {
    %c0_i32 = arith.constant 0 : i32
    %c0_i32_0 = arith.constant 0 : i32
    %c0_i32_1 = arith.constant 0 : i32
    return %arg0, %c0_i32, %c0_i32_0 : i32, i32, i32
  }
  func.func @transform_1(%arg0: i32) -> (i32, i32) {
    %c0_i32 = arith.constant 0 : i32
    %c0_i32_0 = arith.constant 0 : i32
    %c0_i32_1 = arith.constant 0 : i32
    return %c0_i32, %c0_i32_0 : i32, i32
  }
  func.func @transform_2(%arg0: i32) -> (i32, i32, i32) {
    %c0_i32 = arith.constant 0 : i32
    %c0_i32_0 = arith.constant 0 : i32
    %c0_i32_1 = arith.constant 0 : i32
    return %arg0, %c0_i32, %c0_i32_0 : i32, i32, i32
  }
}

</mosaic_0001>

<llo_original>
// kernel: tpu_custom_call.1
$region0: #{tpu_custom_call.1}
  #allocation0 [shape = 'u32[]', space=smem, size = 0x4, offset = 0x4, fixed_abs, tag = 'smem constant byte address 0x4 - core index']
  #allocation1 [shape = 'u32[144,128]{1,0:T(1,128)}', space=vmem, size = 0x12000, scoped, tag = 'internal scratch']
  %s0 = inlined_call_operand.hbm [shape: f32[2,8,32], index: 0, kind: input, shape index: {}]
  %s1 = inlined_call_operand.hbm [shape: bf16[32,96], index: 1, kind: input, shape index: {}]
  %s2 = inlined_call_operand.hbm [shape: f32[2,8,32], index: 2, kind: output, shape index: {}]
  %s3 = sld [smem:[#allocation0]]
  $region49: #{tpu_custom_call.1} parent=0
    _
  %s5 = ssub.s32 1, %s3
  %s6 = scalar_select 0, %s5, %s3
  $region1: #{tpu_custom_call.1} parent=0
    #allocation2 [shape = 'u8[8192]{0}', space=vmem, size = 0x2000, scoped, tag = 'input window, operand 0']
    #allocation3 [shape = 's32[2]{0}', space=sflag, size = 0x8, scoped, tag = 'scoped memory for tpu_custom_call.1']
    #allocation4 [shape = 's32[2]{0}', space=sflag, size = 0x8, scoped, tag = 'scoped memory for tpu_custom_call.1']
    #allocation5 [shape = 'u8[8192]{0}', space=vmem, size = 0x2000, scoped, tag = 'input window, operand 1, single buffered']
    #allocation6 [shape = 's32[1]{0}', space=sflag, size = 0x4, scoped, tag = 'scoped memory for tpu_custom_call.1']
    #allocation7 [shape = 'u8[8192]{0}', space=vmem, size = 0x2000, scoped, tag = 'output window, operand 0']
    %7 = vsyncpa [#allocation3], 0
    %s8 = scalar_lea.sflag [#allocation3], 1
    %9 = vsyncpa %s8, 0
    %10 = vsyncpa [#allocation6], 0
    %11 = vsyncpa [#allocation4], 0
    %s12 = scalar_lea.sflag [#allocation4], 1
    %13 = vsyncpa %s12, 0
    loop: start=0, step=1, limit=4
    $region2: #{tpu_custom_call.1} parent=1 // loop_pre_header
      _
    $region3: #{tpu_custom_call.1} parent=1 // loop_header
      %s15 = sphi 0, %s19
      %p16 = scmp.ge.s32.totalorder %s15, 4
      %s25 = sphi 0, %s27
      %s28 = sphi 0, %s25
      %s29 = sphi 0, %s28
      %s45 = sphi 0, %s29
      %s49 = sphi 0, %s49
      %s51 = sphi 0, %s49
      %s52 = sphi 0, %s51
      %s66 = sphi 0, %s52
      %s72 = sphi 0, %s74
      %s75 = sphi 0, %s72
      %s76 = sphi 0, %s75
      %s92 = sphi 0, %s76
    $region4: #{tpu_custom_call.1} parent=1 // loop_header_branch
      %18 = sbr.rel (%p16) target = $region8
    $region5: #{tpu_custom_call.1} parent=1 // loop_body
      %s20 = ssub.s32 %s15, 1
      %s21 = ssub.s32 %s15, 2
      %s22 = sadd.s32 %s15, 1
      %s23 = ssub.s32 %s15, %s22
      %p24 = scmp.eq.s32.totalorder %s23, 0
      %s26 = sadd.s32 %s25, 1
      %s27 = scalar_select %p24, %s25, %s26
      %p30 = pneg %p24
      %p31 = scmp.eq.s32.totalorder %s15, 1
      %p32 = por %p30, %p31
      %p33 = scmp.ne.s32.totalorder %s25, %s28
      %p34 = scmp.eq.s32.totalorder %s15, 0
      %p35 = por %p33, %p34
      %p36 = scmp.ne.s32.totalorder %s25, %s28
      %p37 = scmp.eq.s32.totalorder %s20, 1
      %p38 = por %p36, %p37
      %p39 = scmp.ne.s32.totalorder %s28, %s29
      %p40 = scmp.eq.s32.totalorder %s20, 0
      %p41 = por %p39, %p40
      %p42 = scmp.ne.s32.totalorder %s28, %s29
      %p43 = scmp.eq.s32.totalorder %s21, 1
      %p44 = por %p42, %p43
      %p46 = scmp.ne.s32.totalorder %s29, %s45
      %p47 = scmp.eq.s32.totalorder %s21, 0
      %p48 = por %p46, %p47
      %s50 = sadd.s32 %s49, 1
      %p53 = scmp.eq.s32.totalorder %s15, 1
      %p54 = scmp.ne.s32.totalorder %s49, %s51
      %p55 = scmp.eq.s32.totalorder %s15, 0
      %p56 = por %p54, %p55
      %p57 = scmp.ne.s32.totalorder %s49, %s51
      %p58 = scmp.eq.s32.totalorder %s20, 1
      %p59 = por %p57, %p58
      %p60 = scmp.ne.s32.totalorder %s51, %s52
      %p61 = scmp.eq.s32.totalorder %s20, 0
      %p62 = por %p60, %p61
      %p63 = scmp.ne.s32.totalorder %s51, %s52
      %p64 = scmp.eq.s32.totalorder %s21, 1
      %p65 = por %p63, %p64
      %p67 = scmp.ne.s32.totalorder %s52, %s66
      %p68 = scmp.eq.s32.totalorder %s21, 0
      %p69 = por %p67, %p68
      %s70 = ssub.s32 %s15, %s22
      %p71 = scmp.eq.s32.totalorder %s70, 0
      %s73 = sadd.s32 %s72, 1
      %s74 = scalar_select %p71, %s72, %s73
      %p77 = pneg %p71
      %p78 = scmp.eq.s32.totalorder %s15, 1
      %p79 = por %p77, %p78
      %p80 = scmp.ne.s32.totalorder %s72, %s75
      %p81 = scmp.eq.s32.totalorder %s15, 0
      %p82 = por %p80, %p81
      %p83 = scmp.ne.s32.totalorder %s72, %s75
      %p84 = scmp.eq.s32.totalorder %s20, 1
      %p85 = por %p83, %p84
      %p86 = scmp.ne.s32.totalorder %s75, %s76
      %p87 = scmp.eq.s32.totalorder %s20, 0
      %p88 = por %p86, %p87
      %p89 = scmp.ne.s32.totalorder %s75, %s76
      %p90 = scmp.eq.s32.totalorder %s21, 1
      %p91 = por %p89, %p90
      %p93 = scmp.ne.s32.totalorder %s76, %s92
      %p94 = scmp.eq.s32.totalorder %s21, 0
      %p95 = por %p93, %p94
      %p96 = scmp.le.s32.totalorder 1, %s15
      %p97 = scmp.lt.s32.totalorder %s15, 3
      %p98 = pnand %p96, %p97
      %p99 = pneg %p98
      // Predicated region
      $region9: #{tpu_custom_call.1} parent=5 // pred_check
        _
      $region10: #{tpu_custom_call.1} parent=5 // pred_check_branch
        %101 = sbr.rel (%p98) target = $region12
      $region11: #{tpu_custom_call.1} parent=5 // pred_region
        %s102 = ssub.s32 %s15, 1
        // Predicated region
        $region13: #{tpu_custom_call.1} parent=11 // pred_check
          %p103 = pneg %p62
        $region14: #{tpu_custom_call.1} parent=11 // pred_check_branch
          %105 = sbr.rel (%p103) target = $region16
        $region15: #{tpu_custom_call.1} parent=11 // pred_region
          %s107 = ssub.s32 256, 256
          %108 = vsyncadd [#allocation6], %s107
          %s109 = sshll.u32 [#allocation5], 4
          %s110 = int_to_ptr.vmem [resolvable:$true] %s109
          %115 = dma.hbm_to_vmem [thread:$0]  %s1, 256, %s110, [#allocation6], 64, 64, 4
        $region16: #{tpu_custom_call.1} parent=11 // pred_fallthru
          _
      $region12: #{tpu_custom_call.1} parent=5 // pred_fallthru
        _
      %p116 = scmp.lt.s32.totalorder %s15, 2
      // Predicated region
      $region17: #{tpu_custom_call.1} parent=5 // pred_check
        %p117 = pneg %p116
      $region18: #{tpu_custom_call.1} parent=5 // pred_check_branch
        %119 = sbr.rel (%p117) target = $region20
      $region19: #{tpu_custom_call.1} parent=5 // pred_region
        // Predicated region
        $region21: #{tpu_custom_call.1} parent=19 // pred_check
          %p120 = pneg %p35
        $region22: #{tpu_custom_call.1} parent=19 // pred_check_branch
          %122 = sbr.rel (%p120) target = $region24
        $region23: #{tpu_custom_call.1} parent=19 // pred_region
          %s123 = sand.u32 %s25, 1
          %s124 = scalar_lea.sflag [#allocation3], %s123
          %s125 = sand.u32 %s25, 1
          %s126 = smul.addr %s125, 8
          %s127 = scalar_lea.vmem [#allocation2], %s126
          %s129 = ssub.s32 128, 128
          %130 = vsyncadd %s124, %s129
          %s131 = smul.addr %s15, 128
          %s132 = scalar_lea.hbm %s0, %s131
          %s134 = sshll.u32 %s127, 4
          %s135 = int_to_ptr.vmem [resolvable:$true] %s134
          %137 = dma.hbm_to_vmem [thread:$0]  %s132, 128, %s135, %s124
        $region24: #{tpu_custom_call.1} parent=19 // pred_fallthru
          _
      $region20: #{tpu_custom_call.1} parent=5 // pred_fallthru
        _
      %p138 = scmp.le.s32.totalorder 1, %s15
      %p139 = scmp.lt.s32.totalorder %s15, 3
      %p140 = pnand %p138, %p139
      %p141 = pneg %p140
      // Predicated region
      $region25: #{tpu_custom_call.1} parent=5 // pred_check
        _
      $region26: #{tpu_custom_call.1} parent=5 // pred_check_branch
        %143 = sbr.rel (%p140) target = $region28
      $region27: #{tpu_custom_call.1} parent=5 // pred_region
        %s144 = ssub.s32 %s15, 1
        %s145 = sand.u32 %s28, 1
        %s146 = scalar_lea.sflag [#allocation3], %s145
        %s147 = sand.u32 %s28, 1
        %s148 = smul.addr %s147, 8
        %s149 = scalar_lea.vmem [#allocation2], %s148
        // Predicated region
        $region29: #{tpu_custom_call.1} parent=27 // pred_check
          %p150 = pneg %p41
        $region30: #{tpu_custom_call.1} parent=27 // pred_check_branch
          %152 = sbr.rel (%p150) target = $region32
        $region31: #{tpu_custom_call.1} parent=27 // pred_region
          %153 = dma.done %s146, 128
        $region32: #{tpu_custom_call.1} parent=27 // pred_fallthru
          _
        // Predicated region
        $region33: #{tpu_custom_call.1} parent=27 // pred_check
          %p154 = pneg %p62
        $region34: #{tpu_custom_call.1} parent=27 // pred_check_branch
          %156 = sbr.rel (%p154) target = $region36
        $region35: #{tpu_custom_call.1} parent=27 // pred_region
          %157 = dma.done [#allocation6], 256
        $region36: #{tpu_custom_call.1} parent=27 // pred_fallthru
          _
        %s158 = sand.u32 %s28, 1
        %s159 = scalar_lea.sflag [#allocation3], %s158
        %s160 = sand.u32 %s28, 1
        %s161 = smul.addr %s160, 8
        %s162 = scalar_lea.vmem [#allocation2], %s161
        %p163 = pneg %p41
        %p164 = pneg %p38
        %p165 = pneg %p62
        %p166 = pneg %p59
        %p167 = pneg %p88
        %p168 = pneg %p85
        %s169 = sand.u32 %s75, 1
        %s170 = scalar_lea.sflag [#allocation4], %s169
        %s171 = sand.u32 %s75, 1
        %s172 = smul.addr %s171, 8
        %s173 = scalar_lea.vmem [#allocation7], %s172
        %v175 = vld [vmem:[%s149] sm:$0xff]
        %v176 = vpack.c.bf16 %v175, %v175
        %v177 = vld [vmem:[#allocation5] sm:$0xf]
        %v178 = vld [vmem:[#allocation5 + $0x4] sm:$0xf]
        %v179 = vld [vmem:[#allocation5 + $0x8] sm:$0xf]
        %v180 = vld [vmem:[#allocation5 + $0xc] sm:$0xf]
        %v185 = vunpack.c.l.b16 %v177
        %v186 = vunpack.c.l.b16 %v178
        %v187 = vunpack.c.l.b16 %v179
        %v188 = vunpack.c.l.b16 %v180
        %v189 = vpack.c.b16 %v186, %v185
        %v190 = vpack.c.b16 %v188, %v187
        %vm193 = vcmask 261120
        %v195 = vsel %vm193, %v176, 0
        %197 = vmatprep.subr.bf16.mxu0 0
        %198 = vmatpush1.bf16.msra.mxu0 %v189
        %199 = vmatprep.subr.bf16.mxu0 0
        %200 = vmatpush1.bf16.msra.mxu0 %v190
        %201 = vmatprep.subr.bf16.mxu0 0
        %202 = vmatpush1.bf16.msra.mxu0 0
        %203 = vmatprep.subr.bf16.mxu0 0
        %204 = vmatpush1.bf16.msra.mxu0 0
        %205 = vmatprep.subr.bf16.mxu0 0
        %206 = vmatpush1.bf16.msra.mxu0 0
        %207 = vmatprep.subr.bf16.mxu0 0
        %208 = vmatpush1.bf16.msra.mxu0 0
        %209 = vmatprep.subr.bf16.mxu0 0
        %210 = vmatpush1.bf16.msra.mxu0 0
        %211 = vmatprep.subr.bf16.mxu0 0
        %212 = vmatpush1.bf16.msra.mxu0 0
        %213 = vmatprep.subr.bf16.mxu0 0
        %214 = vmatpush1.bf16.msra.mxu0 0
        %215 = vmatprep.subr.bf16.mxu0 0
        %216 = vmatpush1.bf16.msra.mxu0 0
        %217 = vmatprep.subr.bf16.mxu0 0
        %218 = vmatpush1.bf16.msra.mxu0 0
        %219 = vmatprep.subr.bf16.mxu0 0
        %220 = vmatpush1.bf16.msra.mxu0 0
        %221 = vmatprep.subr.bf16.mxu0 0
        %222 = vmatpush1.bf16.msra.mxu0 0
        %223 = vmatprep.subr.bf16.mxu0 0
        %224 = vmatpush1.bf16.msra.mxu0 0
        %225 = vmatprep.subr.bf16.mxu0 0
        %226 = vmatpush1.bf16.msra.mxu0 0
        %227 = vmatprep.subr.bf16.mxu0 0
        %228 = vmatpush1.bf16.msra.mxu0 0
        %229 = vmatprep.mubr.bf16.mxu0 0
        %230 = vmatmul.mubr.bf16.gmra.mrb[0].mxu0 %v195
        %v231 = vpop.f32.mrb[0].mxu0
        %v232 = vadd.f32 0.0, %v231
        %v233 = vpop.f32.mrb[0].mxu0
        %v234 = vpop.f32.mrb[0].mxu0
        %v235 = vpop.f32.mrb[0].mxu0
        %236 = vdwg.mxu0
        %v237 = vpack.c.bf16 %v232, %v232
        %239 = vrot.lane.b32.xlu0 %v237, 96
        %v240 = vpop.permute.xlu0 %239
        %vm241 = vcmask 64512
        %v243 = vsel %vm241, %v237, 0
        %v246 = vsel %vm241, %v240, 0
        %248 = vmatprep.subr.bf16.mxu0 0
        %249 = vmatpush1.bf16.xpose.msra.mxu0 %v246
        %250 = vmatprep.subr.bf16.mxu0 0
        %251 = vmatpush1.bf16.xpose.msra.mxu0 0
        %252 = vmatprep.subr.bf16.mxu0 0
        %253 = vmatpush1.bf16.xpose.msra.mxu0 0
        %254 = vmatprep.subr.bf16.mxu0 0
        %255 = vmatpush1.bf16.xpose.msra.mxu0 0
        %256 = vmatprep.subr.bf16.mxu0 0
        %257 = vmatpush1.bf16.xpose.msra.mxu0 0
        %258 = vmatprep.subr.bf16.mxu0 0
        %259 = vmatpush1.bf16.xpose.msra.mxu0 0
        %260 = vmatprep.subr.bf16.mxu0 0
        %261 = vmatpush1.bf16.xpose.msra.mxu0 0
        %262 = vmatprep.subr.bf16.mxu0 0
        %263 = vmatpush1.bf16.xpose.msra.mxu0 0
        %264 = vmatprep.subr.bf16.mxu0 0
        %265 = vmatpush1.bf16.xpose.msra.mxu0 0
        %266 = vmatprep.subr.bf16.mxu0 0
        %267 = vmatpush1.bf16.xpose.msra.mxu0 0
        %268 = vmatprep.subr.bf16.mxu0 0
        %269 = vmatpush1.bf16.xpose.msra.mxu0 0
        %270 = vmatprep.subr.bf16.mxu0 0
        %271 = vmatpush1.bf16.xpose.msra.mxu0 0
        %272 = vmatprep.subr.bf16.mxu0 0
        %273 = vmatpush1.bf16.xpose.msra.mxu0 0
        %274 = vmatprep.subr.bf16.mxu0 0
        %275 = vmatpush1.bf16.xpose.msra.mxu0 0
        %276 = vmatprep.subr.bf16.mxu0 0
        %277 = vmatpush1.bf16.xpose.msra.mxu0 0
        %278 = vmatprep.subr.bf16.mxu0 0
        %279 = vmatpush1.bf16.xpose.msra.mxu0 0
        %280 = vmatprep.mubr.bf16.mxu0 0
        %281 = vmatmul.mubr.bf16.gmra.mrb[0].mxu0 %v243
        %v282 = vpop.f32.mrb[0].mxu0
        %v283 = vadd.f32 0.0, %v282
        %v284 = vpop.f32.mrb[0].mxu0
        %v285 = vpop.f32.mrb[0].mxu0
        %v286 = vpop.f32.mrb[0].mxu0
        %287 = vdwg.mxu0
        %v288 = vpack.c.bf16 %v283, %v283
        %289 = vrot.lane.b32.xlu0 %v237, 64
        %v290 = vpop.permute.xlu0 %289
        %v292 = vsel %vm241, %v288, 0
        %vm294 = vcmask 1043456
        %v296 = vsel %vm294, %v290, 0
        %298 = vmatprep.subr.bf16.mxu0 0
        %299 = vmatpush1.bf16.msra.mxu0 %v296
        %300 = vmatprep.subr.bf16.mxu0 0
        %301 = vmatpush1.bf16.msra.mxu0 0
        %302 = vmatprep.subr.bf16.mxu0 0
        %303 = vmatpush1.bf16.msra.mxu0 0
        %304 = vmatprep.subr.bf16.mxu0 0
        %305 = vmatpush1.bf16.msra.mxu0 0
        %306 = vmatprep.subr.bf16.mxu0 0
        %307 = vmatpush1.bf16.msra.mxu0 0
        %308 = vmatprep.subr.bf16.mxu0 0
        %309 = vmatpush1.bf16.msra.mxu0 0
        %310 = vmatprep.subr.bf16.mxu0 0
        %311 = vmatpush1.bf16.msra.mxu0 0
        %312 = vmatprep.subr.bf16.mxu0 0
        %313 = vmatpush1.bf16.msra.mxu0 0
        %314 = vmatprep.subr.bf16.mxu0 0
        %315 = vmatpush1.bf16.msra.mxu0 0
        %316 = vmatprep.subr.bf16.mxu0 0
        %317 = vmatpush1.bf16.msra.mxu0 0
        %318 = vmatprep.subr.bf16.mxu0 0
        %319 = vmatpush1.bf16.msra.mxu0 0
        %320 = vmatprep.subr.bf16.mxu0 0
        %321 = vmatpush1.bf16.msra.mxu0 0
        %322 = vmatprep.subr.bf16.mxu0 0
        %323 = vmatpush1.bf16.msra.mxu0 0
        %324 = vmatprep.subr.bf16.mxu0 0
        %325 = vmatpush1.bf16.msra.mxu0 0
        %326 = vmatprep.subr.bf16.mxu0 0
        %327 = vmatpush1.bf16.msra.mxu0 0
        %328 = vmatprep.subr.bf16.mxu0 0
        %329 = vmatpush1.bf16.msra.mxu0 0
        %330 = vmatprep.mubr.bf16.mxu0 0
        %331 = vmatmul.mubr.bf16.gmra.mrb[0].mxu0 %v292
        %v332 = vpop.f32.mrb[0].mxu0
        %v333 = vadd.f32 0.0, %v332
        %v334 = vpop.f32.mrb[0].mxu0
        %v335 = vpop.f32.mrb[0].mxu0
        %v336 = vpop.f32.mrb[0].mxu0
        %337 = vdwg.mxu0
        %338 = vrot.lane.b32.xlu0 %v237, 120
        %v339 = vpop.permute.xlu0 %338
        %340 = vrot.lane.b32.xlu0 %v237, 88
        %v341 = vpop.permute.xlu0 %340
        %v343 = vsel %vm241, %v339, 0
        %v346 = vsel %vm241, %v341, 0
        %348 = vmatprep.subr.bf16.mxu0 0
        %349 = vmatpush1.bf16.xpose.msra.mxu0 %v346
        %350 = vmatprep.subr.bf16.mxu0 0
        %351 = vmatpush1.bf16.xpose.msra.mxu0 0
        %352 = vmatprep.subr.bf16.mxu0 0
        %353 = vmatpush1.bf16.xpose.msra.mxu0 0
        %354 = vmatprep.subr.bf16.mxu0 0
        %355 = vmatpush1.bf16.xpose.msra.mxu0 0
        %356 = vmatprep.subr.bf16.mxu0 0
        %357 = vmatpush1.bf16.xpose.msra.mxu0 0
        %358 = vmatprep.subr.bf16.mxu0 0
        %359 = vmatpush1.bf16.xpose.msra.mxu0 0
        %360 = vmatprep.subr.bf16.mxu0 0
        %361 = vmatpush1.bf16.xpose.msra.mxu0 0
        %362 = vmatprep.subr.bf16.mxu0 0
        %363 = vmatpush1.bf16.xpose.msra.mxu0 0
        %364 = vmatprep.subr.bf16.mxu0 0
        %365 = vmatpush1.bf16.xpose.msra.mxu0 0
        %366 = vmatprep.subr.bf16.mxu0 0
        %367 = vmatpush1.bf16.xpose.msra.mxu0 0
        %368 = vmatprep.subr.bf16.mxu0 0
        %369 = vmatpush1.bf16.xpose.msra.mxu0 0
        %370 = vmatprep.subr.bf16.mxu0 0
        %371 = vmatpush1.bf16.xpose.msra.mxu0 0
        %372 = vmatprep.subr.bf16.mxu0 0
        %373 = vmatpush1.bf16.xpose.msra.mxu0 0
        %374 = vmatprep.subr.bf16.mxu0 0
        %375 = vmatpush1.bf16.xpose.msra.mxu0 0
        %376 = vmatprep.subr.bf16.mxu0 0
        %377 = vmatpush1.bf16.xpose.msra.mxu0 0
        %378 = vmatprep.subr.bf16.mxu0 0
        %379 = vmatpush1.bf16.xpose.msra.mxu0 0
        %380 = vmatprep.mubr.bf16.mxu0 0
        %381 = vmatmul.mubr.bf16.gmra.mrb[0].mxu0 %v343
        %v382 = vpop.f32.mrb[0].mxu0
        %v383 = vadd.f32 0.0, %v382
        %v384 = vpop.f32.mrb[0].mxu0
        %v385 = vpop.f32.mrb[0].mxu0
        %v386 = vpop.f32.mrb[0].mxu0
        %387 = vdwg.mxu0
        %v388 = vpack.c.bf16 %v383, %v383
        %389 = vrot.lane.b32.xlu0 %v237, 56
        %v390 = vpop.permute.xlu0 %389
        %v392 = vsel %vm241, %v388, 0
        %v395 = vsel %vm294, %v390, 0
        %397 = vmatprep.subr.bf16.mxu0 0
        %398 = vmatpush1.bf16.msra.mxu0 %v395
        %399 = vmatprep.subr.bf16.mxu0 0
        %400 = vmatpush1.bf16.msra.mxu0 0
        %401 = vmatprep.subr.bf16.mxu0 0
        %402 = vmatpush1.bf16.msra.mxu0 0
        %403 = vmatprep.subr.bf16.mxu0 0
        %404 = vmatpush1.bf16.msra.mxu0 0
        %405 = vmatprep.subr.bf16.mxu0 0
        %406 = vmatpush1.bf16.msra.mxu0 0
        %407 = vmatprep.subr.bf16.mxu0 0
        %408 = vmatpush1.bf16.msra.mxu0 0
        %409 = vmatprep.subr.bf16.mxu0 0
        %410 = vmatpush1.bf16.msra.mxu0 0
        %411 = vmatprep.subr.bf16.mxu0 0
        %412 = vmatpush1.bf16.msra.mxu0 0
        %413 = vmatprep.subr.bf16.mxu0 0
        %414 = vmatpush1.bf16.msra.mxu0 0
        %415 = vmatprep.subr.bf16.mxu0 0
        %416 = vmatpush1.bf16.msra.mxu0 0
        %417 = vmatprep.subr.bf16.mxu0 0
        %418 = vmatpush1.bf16.msra.mxu0 0
        %419 = vmatprep.subr.bf16.mxu0 0
        %420 = vmatpush1.bf16.msra.mxu0 0
        %421 = vmatprep.subr.bf16.mxu0 0
        %422 = vmatpush1.bf16.msra.mxu0 0
        %423 = vmatprep.subr.bf16.mxu0 0
        %424 = vmatpush1.bf16.msra.mxu0 0
        %425 = vmatprep.subr.bf16.mxu0 0
        %426 = vmatpush1.bf16.msra.mxu0 0
        %427 = vmatprep.subr.bf16.mxu0 0
        %428 = vmatpush1.bf16.msra.mxu0 0
        %429 = vmatprep.mubr.bf16.mxu0 0
        %430 = vmatmul.mubr.bf16.gmra.mrb[0].mxu0 %v392
        %v431 = vpop.f32.mrb[0].mxu0
        %v432 = vadd.f32 0.0, %v431
        %v433 = vpop.f32.mrb[0].mxu0
        %v434 = vpop.f32.mrb[0].mxu0
        %v435 = vpop.f32.mrb[0].mxu0
        %436 = vdwg.mxu0
        %437 = vrot.lane.b32.xlu0 %v237, 112
        %v438 = vpop.permute.xlu0 %437
        %439 = vrot.lane.b32.xlu0 %v237, 80
        %v440 = vpop.permute.xlu0 %439
        %v442 = vsel %vm241, %v438, 0
        %v445 = vsel %vm241, %v440, 0
        %447 = vmatprep.subr.bf16.mxu0 0
        %448 = vmatpush1.bf16.xpose.msra.mxu0 %v445
        %449 = vmatprep.subr.bf16.mxu0 0
        %450 = vmatpush1.bf16.xpose.msra.mxu0 0
        %451 = vmatprep.subr.bf16.mxu0 0
        %452 = vmatpush1.bf16.xpose.msra.mxu0 0
        %453 = vmatprep.subr.bf16.mxu0 0
        %454 = vmatpush1.bf16.xpose.msra.mxu0 0
        %455 = vmatprep.subr.bf16.mxu0 0
        %456 = vmatpush1.bf16.xpose.msra.mxu0 0
        %457 = vmatprep.subr.bf16.mxu0 0
        %458 = vmatpush1.bf16.xpose.msra.mxu0 0
        %459 = vmatprep.subr.bf16.mxu0 0
        %460 = vmatpush1.bf16.xpose.msra.mxu0 0
        %461 = vmatprep.subr.bf16.mxu0 0
        %462 = vmatpush1.bf16.xpose.msra.mxu0 0
        %463 = vmatprep.subr.bf16.mxu0 0
        %464 = vmatpush1.bf16.xpose.msra.mxu0 0
        %465 = vmatprep.subr.bf16.mxu0 0
        %466 = vmatpush1.bf16.xpose.msra.mxu0 0
        %467 = vmatprep.subr.bf16.mxu0 0
        %468 = vmatpush1.bf16.xpose.msra.mxu0 0
        %469 = vmatprep.subr.bf16.mxu0 0
        %470 = vmatpush1.bf16.xpose.msra.mxu0 0
        %471 = vmatprep.subr.bf16.mxu0 0
        %472 = vmatpush1.bf16.xpose.msra.mxu0 0
        %473 = vmatprep.subr.bf16.mxu0 0
        %474 = vmatpush1.bf16.xpose.msra.mxu0 0
        %475 = vmatprep.subr.bf16.mxu0 0
        %476 = vmatpush1.bf16.xpose.msra.mxu0 0
        %477 = vmatprep.subr.bf16.mxu0 0
        %478 = vmatpush1.bf16.xpose.msra.mxu0 0
        %479 = vmatprep.mubr.bf16.mxu0 0
        %480 = vmatmul.mubr.bf16.gmra.mrb[0].mxu0 %v442
        %v481 = vpop.f32.mrb[0].mxu0
        %v482 = vadd.f32 0.0, %v481
        %v483 = vpop.f32.mrb[0].mxu0
        %v484 = vpop.f32.mrb[0].mxu0
        %v485 = vpop.f32.mrb[0].mxu0
        %486 = vdwg.mxu0
        %v487 = vpack.c.bf16 %v482, %v482
        %488 = vrot.lane.b32.xlu0 %v237, 48
        %v489 = vpop.permute.xlu0 %488
        %v491 = vsel %vm241, %v487, 0
        %v494 = vsel %vm294, %v489, 0
        %496 = vmatprep.subr.bf16.mxu0 0
        %497 = vmatpush1.bf16.msra.mxu0 %v494
        %498 = vmatprep.subr.bf16.mxu0 0
        %499 = vmatpush1.bf16.msra.mxu0 0
        %500 = vmatprep.subr.bf16.mxu0 0
        %501 = vmatpush1.bf16.msra.mxu0 0
        %502 = vmatprep.subr.bf16.mxu0 0
        %503 = vmatpush1.bf16.msra.mxu0 0
        %504 = vmatprep.subr.bf16.mxu0 0
        %505 = vmatpush1.bf16.msra.mxu0 0
        %506 = vmatprep.subr.bf16.mxu0 0
        %507 = vmatpush1.bf16.msra.mxu0 0
        %508 = vmatprep.subr.bf16.mxu0 0
        %509 = vmatpush1.bf16.msra.mxu0 0
        %510 = vmatprep.subr.bf16.mxu0 0
        %511 = vmatpush1.bf16.msra.mxu0 0
        %512 = vmatprep.subr.bf16.mxu0 0
        %513 = vmatpush1.bf16.msra.mxu0 0
        %514 = vmatprep.subr.bf16.mxu0 0
        %515 = vmatpush1.bf16.msra.mxu0 0
        %516 = vmatprep.subr.bf16.mxu0 0
        %517 = vmatpush1.bf16.msra.mxu0 0
        %518 = vmatprep.subr.bf16.mxu0 0
        %519 = vmatpush1.bf16.msra.mxu0 0
        %520 = vmatprep.subr.bf16.mxu0 0
        %521 = vmatpush1.bf16.msra.mxu0 0
        %522 = vmatprep.subr.bf16.mxu0 0
        %523 = vmatpush1.bf16.msra.mxu0 0
        %524 = vmatprep.subr.bf16.mxu0 0
        %525 = vmatpush1.bf16.msra.mxu0 0
        %526 = vmatprep.subr.bf16.mxu0 0
        %527 = vmatpush1.bf16.msra.mxu0 0
        %528 = vmatprep.mubr.bf16.mxu0 0
        %529 = vmatmul.mubr.bf16.gmra.mrb[0].mxu0 %v491
        %v530 = vpop.f32.mrb[0].mxu0
        %v531 = vadd.f32 0.0, %v530
        %v532 = vpop.f32.mrb[0].mxu0
        %v533 = vpop.f32.mrb[0].mxu0
        %v534 = vpop.f32.mrb[0].mxu0
        %535 = vdwg.mxu0
        %536 = vrot.lane.b32.xlu0 %v237, 104
        %v537 = vpop.permute.xlu0 %536
        %538 = vrot.lane.b32.xlu0 %v237, 72
        %v539 = vpop.permute.xlu0 %538
        %v541 = vsel %vm241, %v537, 0
        %v544 = vsel %vm241, %v539, 0
        %546 = vmatprep.subr.bf16.mxu0 0
        %547 = vmatpush1.bf16.xpose.msra.mxu0 %v544
        %548 = vmatprep.subr.bf16.mxu0 0
        %549 = vmatpush1.bf16.xpose.msra.mxu0 0
        %550 = vmatprep.subr.bf16.mxu0 0
        %551 = vmatpush1.bf16.xpose.msra.mxu0 0
        %552 = vmatprep.subr.bf16.mxu0 0
        %553 = vmatpush1.bf16.xpose.msra.mxu0 0
        %554 = vmatprep.subr.bf16.mxu0 0
        %555 = vmatpush1.bf16.xpose.msra.mxu0 0
        %556 = vmatprep.subr.bf16.mxu0 0
        %557 = vmatpush1.bf16.xpose.msra.mxu0 0
        %558 = vmatprep.subr.bf16.mxu0 0
        %559 = vmatpush1.bf16.xpose.msra.mxu0 0
        %560 = vmatprep.subr.bf16.mxu0 0
        %561 = vmatpush1.bf16.xpose.msra.mxu0 0
        %562 = vmatprep.subr.bf16.mxu0 0
        %563 = vmatpush1.bf16.xpose.msra.mxu0 0
        %564 = vmatprep.subr.bf16.mxu0 0
        %565 = vmatpush1.bf16.xpose.msra.mxu0 0
        %566 = vmatprep.subr.bf16.mxu0 0
        %567 = vmatpush1.bf16.xpose.msra.mxu0 0
        %568 = vmatprep.subr.bf16.mxu0 0
        %569 = vmatpush1.bf16.xpose.msra.mxu0 0
        %570 = vmatprep.subr.bf16.mxu0 0
        %571 = vmatpush1.bf16.xpose.msra.mxu0 0
        %572 = vmatprep.subr.bf16.mxu0 0
        %573 = vmatpush1.bf16.xpose.msra.mxu0 0
        %574 = vmatprep.subr.bf16.mxu0 0
        %575 = vmatpush1.bf16.xpose.msra.mxu0 0
        %576 = vmatprep.subr.bf16.mxu0 0
        %577 = vmatpush1.bf16.xpose.msra.mxu0 0
        %578 = vmatprep.mubr.bf16.mxu0 0
        %579 = vmatmul.mubr.bf16.gmra.mrb[0].mxu0 %v541
        %v580 = vpop.f32.mrb[0].mxu0
        %v581 = vadd.f32 0.0, %v580
        %v582 = vpop.f32.mrb[0].mxu0
        %v583 = vpop.f32.mrb[0].mxu0
        %v584 = vpop.f32.mrb[0].mxu0
        %585 = vdwg.mxu0
        %v586 = vpack.c.bf16 %v581, %v581
        %587 = vrot.lane.b32.xlu0 %v237, 40
        %v588 = vpop.permute.xlu0 %587
        %v590 = vsel %vm241, %v586, 0
        %v593 = vsel %vm294, %v588, 0
        %595 = vmatprep.subr.bf16.mxu0 0
        %596 = vmatpush1.bf16.msra.mxu0 %v593
        %597 = vmatprep.subr.bf16.mxu0 0
        %598 = vmatpush1.bf16.msra.mxu0 0
        %599 = vmatprep.subr.bf16.mxu0 0
        %600 = vmatpush1.bf16.msra.mxu0 0
        %601 = vmatprep.subr.bf16.mxu0 0
        %602 = vmatpush1.bf16.msra.mxu0 0
        %603 = vmatprep.subr.bf16.mxu0 0
        %604 = vmatpush1.bf16.msra.mxu0 0
        %605 = vmatprep.subr.bf16.mxu0 0
        %606 = vmatpush1.bf16.msra.mxu0 0
        %607 = vmatprep.subr.bf16.mxu0 0
        %608 = vmatpush1.bf16.msra.mxu0 0
        %609 = vmatprep.subr.bf16.mxu0 0
        %610 = vmatpush1.bf16.msra.mxu0 0
        %611 = vmatprep.subr.bf16.mxu0 0
        %612 = vmatpush1.bf16.msra.mxu0 0
        %613 = vmatprep.subr.bf16.mxu0 0
        %614 = vmatpush1.bf16.msra.mxu0 0
        %615 = vmatprep.subr.bf16.mxu0 0
        %616 = vmatpush1.bf16.msra.mxu0 0
        %617 = vmatprep.subr.bf16.mxu0 0
        %618 = vmatpush1.bf16.msra.mxu0 0
        %619 = vmatprep.subr.bf16.mxu0 0
        %620 = vmatpush1.bf16.msra.mxu0 0
        %621 = vmatprep.subr.bf16.mxu0 0
        %622 = vmatpush1.bf16.msra.mxu0 0
        %623 = vmatprep.subr.bf16.mxu0 0
        %624 = vmatpush1.bf16.msra.mxu0 0
        %625 = vmatprep.subr.bf16.mxu0 0
        %626 = vmatpush1.bf16.msra.mxu0 0
        %627 = vmatprep.mubr.bf16.mxu0 0
        %628 = vmatmul.mubr.bf16.gmra.mrb[0].mxu0 %v590
        %v629 = vpop.f32.mrb[0].mxu0
        %v630 = vadd.f32 0.0, %v629
        %v631 = vpop.f32.mrb[0].mxu0
        %v632 = vpop.f32.mrb[0].mxu0
        %v633 = vpop.f32.mrb[0].mxu0
        %634 = vdwg.mxu0
        %636 = vrot.lane.b32.xlu0 %v432, 8
        %v637 = vpop.permute.xlu0 %636
        %640 = vrot.lane.b32.xlu0 %v531, 16
        %v641 = vpop.permute.xlu0 %640
        %644 = vrot.lane.b32.xlu0 %v630, 24
        %v645 = vpop.permute.xlu0 %644
        %v647 = vsel %vm241, %v333, %v637
        %vm648 = vcmask 130048
        %v649 = vsel %vm648, %v647, %v641
        %vm650 = vcmask 195584
        %v651 = vsel %vm650, %v649, %v645
        %652 = vst.msk [vmem:[%s173] sm:$0xff] %vm193, %v651
        %s653 = sand.u32 %s75, 1
        %s654 = scalar_lea.sflag [#allocation4], %s653
        %s655 = sand.u32 %s75, 1
        %s656 = smul.addr %s655, 8
        %s657 = scalar_lea.vmem [#allocation7], %s656
        // Predicated region
        $region37: #{tpu_custom_call.1} parent=27 // pred_check
          %p658 = pneg %p85
        $region38: #{tpu_custom_call.1} parent=27 // pred_check_branch
          %660 = sbr.rel (%p658) target = $region40
        $region39: #{tpu_custom_call.1} parent=27 // pred_region
          %s662 = ssub.s32 128, 128
          %663 = vsyncadd %s654, %s662
          %s664 = smul.addr %s20, 128
          %s665 = scalar_lea.hbm %s2, %s664
          %s667 = sshll.u32 %s657, 4
          %s668 = int_to_ptr.vmem [resolvable:$true] %s667
          %670 = dma.vmem_to_hbm [thread:$0]  %s668, 128, %s665, %s654
        $region40: #{tpu_custom_call.1} parent=27 // pred_fallthru
          _
      $region28: #{tpu_custom_call.1} parent=5 // pred_fallthru
        _
      %p671 = scmp.le.s32.totalorder 2, %s15
      // Predicated region
      $region41: #{tpu_custom_call.1} parent=5 // pred_check
        %p672 = pneg %p671
      $region42: #{tpu_custom_call.1} parent=5 // pred_check_branch
        %674 = sbr.rel (%p672) target = $region44
      $region43: #{tpu_custom_call.1} parent=5 // pred_region
        %s675 = ssub.s32 %s15, 2
        // Predicated region
        $region45: #{tpu_custom_call.1} parent=43 // pred_check
          %p676 = pneg %p91
        $region46: #{tpu_custom_call.1} parent=43 // pred_check_branch
          %678 = sbr.rel (%p676) target = $region48
        $region47: #{tpu_custom_call.1} parent=43 // pred_region
          %s679 = sand.u32 %s76, 1
          %s680 = scalar_lea.sflag [#allocation4], %s679
          %s681 = sand.u32 %s76, 1
          %s682 = smul.addr %s681, 8
          %s683 = scalar_lea.vmem [#allocation7], %s682
          %684 = dma.done %s680, 128
        $region48: #{tpu_custom_call.1} parent=43 // pred_fallthru
          _
      $region44: #{tpu_custom_call.1} parent=5 // pred_fallthru
        _
    $region6: #{tpu_custom_call.1} parent=1 // loop_footer
      %s19 = sadd.s32 1, %s15
    $region7: #{tpu_custom_call.1} parent=1 // loop_footer_branch
      %14 = sbr.rel target = $region3
    $region8: #{tpu_custom_call.1} parent=1 // loop_exit
      _
    %685 = vsyncpa [#allocation3], 1
    %s686 = scalar_lea.sflag [#allocation3], 1
    %687 = vsyncpa %s686, 1
    %688 = vsyncpa [#allocation6], 1
    %689 = vsyncpa [#allocation4], 1
    %s690 = scalar_lea.sflag [#allocation4], 1
    %691 = vsyncpa %s690, 1

</llo_original>
